<compile_context>
chip_gen: v7x
topology: tpu7x:2x2x1
jax: 0.10.0
libtpu: 0.0.40
codegen_flags: <defaults>
</compile_context>

<pallas_src>
import functools
import math

import jax
import jax.numpy as jnp
from jax.experimental import pallas as pl
from jax.experimental.pallas import tpu as pltpu

_INV_SQRT2 = 0.7071067811865476        # hoisted multiply instead of divide
_SQRT_2_OVER_PI = 0.7978845608028654


def _round_up(x, m):
    return ((x + m - 1) // m) * m


def _sublane_multiple(dtype):
    isz = jnp.dtype(dtype).itemsize
    if isz >= 4:
        return 8
    if isz == 2:
        return 16
    return 32


def _default_vmem_budget():
    """3/4 of physical VMEM (leaves compiler scratch/semaphore headroom), <=112 MiB."""
    phys = 64 * 1024 * 1024  # conservative fallback (v7x per-TC VMEM)
    try:
        info = pltpu.get_tpu_info()
        phys = int(getattr(info, "vmem_capacity_bytes", 0)) or phys
    except Exception:
        pass
    return min((phys * 3) // 4, 112 * 1024 * 1024)


def _pad2d(a, rows, cols):
    pr, pc = rows - a.shape[0], cols - a.shape[1]
    if pr == 0 and pc == 0:
        return a
    return jnp.pad(a, ((0, pr), (0, pc)))


def _gelu(h, approx):
    if approx:
        # tanh-approx GELU: the tanh runs on the EUP (separate VLIW slot), freeing the
        # VALU that the ~20-op erf polynomial would otherwise bind on v6e/v7x.
        return 0.5 * h * (1.0 + jnp.tanh(_SQRT_2_OVER_PI * (h + 0.044715 * (h * h * h))))
    # exact erf-GELU (matches torch.nn.GELU default)
    return 0.5 * h * (1.0 + jax.lax.erf(h * _INV_SQRT2))


# ----------------------------------------------------------------------------------
# Kernels
# ----------------------------------------------------------------------------------
def _mlp_kernel_resident(x_ref, w1_ref, b1_ref, w2_ref, b2_ref, o_ref, *, approx_gelu):
    # Weight-stationary path: W1/W2/b1/b2 have constant block indices -> DMA'd once.
    # x_ref: (tm, D_in_p), w1_ref: (D_in_p, D_hid_p), w2_ref: (D_hid_p, D_out_p)
    h = jnp.dot(x_ref[...], w1_ref[...], preferred_element_type=jnp.float32)
    h = h + b1_ref[...].astype(jnp.float32)
    h = _gelu(h, approx_gelu)
    # dropout (eval) == identity
    out = jnp.dot(h.astype(w2_ref.dtype), w2_ref[...],
                  preferred_element_type=jnp.float32)
    out = out + b2_ref[...].astype(jnp.float32)
    # dropout (eval) == identity
    o_ref[...] = out.astype(o_ref.dtype)


def _mlp_kernel_ksplit(x_ref, w1_ref, b1_ref, w2_ref, b2_ref, o_ref, acc_ref, *,
                       approx_gelu):
    # Fallback path: hidden dim is a reduction grid axis with an f32 accumulator.
    # x_ref: (tm, D_in_p), w1_ref: (D_in_p, tk), w2_ref: (tk, D_out_p)
    k = pl.program_id(1)

    @pl.when(k == 0)
    def _init():
        # init with b2 broadcast (saves a full tm x D_out VPU pass in finalize)
        acc_ref[...] = jnp.broadcast_to(b2_ref[...].astype(jnp.float32),
                                        acc_ref.shape)

    h = jnp.dot(x_ref[...], w1_ref[...], preferred_element_type=jnp.float32)
    h = h + b1_ref[...].astype(jnp.float32)
    h = _gelu(h, approx_gelu)          # elementwise -> exact per hidden chunk
    # dropout (eval) == identity
    acc_ref[...] += jnp.dot(h.astype(w2_ref.dtype), w2_ref[...],
                            preferred_element_type=jnp.float32)

    @pl.when(k == pl.num_programs(1) - 1)
    def _finalize():
        o_ref[...] = acc_ref[...].astype(o_ref.dtype)


# ----------------------------------------------------------------------------------
# Wrapper
# ----------------------------------------------------------------------------------
def standard_mlp(x, w1, b1, w2, b2, *, tm=1024, tk_hidden=None,
                 compute_dtype=None, approx_gelu=False,
                 vmem_cap_bytes=None, force_ksplit=False):
    """Fused MLP: GELU(x @ w1 + b1) @ w2 + b2  (eval-mode dropout == identity).

    x: [..., D_in]; w1: [D_in, D_hid]; b1: [D_hid]; w2: [D_hid, D_out]; b2: [D_out].
    Weights are stored pre-transposed relative to torch nn.Linear (y = x @ W + b).
    compute_dtype=jnp.bfloat16 casts x/w1/w2 to bf16 MXU operands (f32 accumulation
    kept); approx_gelu=True uses the tanh GELU approximation (EUP instead of VALU).
    """
    orig_dtype = x.dtype
    *lead, D_in = x.shape
    d_in_w, D_hid = w1.shape
    d_hid_w, D_out = w2.shape
    assert d_in_w == D_in and d_hid_w == D_hid
    assert b1.shape == (D_hid,) and b2.shape == (D_out,)
    M = int(math.prod(lead)) if lead else 1

    # Optional bf16 MXU operands for f32 callers (3-6x MXU, half the HBM traffic).
    if compute_dtype is not None:
        x = x.astype(compute_dtype)
        w1 = w1.astype(compute_dtype)
        w2 = w2.astype(compute_dtype)
    op_dtype = x.dtype
    op_isz = jnp.dtype(op_dtype).itemsize
    b_isz = jnp.dtype(b1.dtype).itemsize
    out_isz = jnp.dtype(orig_dtype).itemsize
    sub = _sublane_multiple(op_dtype)

    # ---- lane-dense feature padding (no-op for standard ViT widths) ----------------
    D_in_p = _round_up(D_in, 128)
    D_out_p = _round_up(D_out, 128)
    D_hid_p = _round_up(D_hid, 128)

    # ---- token tile -----------------------------------------------------------------
    # big tile for arithmetic intensity / fewer grid steps, clamped to the token count
    # and so that n_i >= 2 where possible (keeps both v7x TensorCores busy).
    tm = max(sub, _round_up(min(int(tm), _round_up(M, sub)), sub))
    if M > sub:
        tm = min(tm, _round_up(pl.cdiv(M, 2), sub))
    n_i = pl.cdiv(M, tm)
    M_p = n_i * tm

    budget = int(vmem_cap_bytes) if vmem_cap_bytes is not None else _default_vmem_budget()

    # double-buffered activation tiles (x in op dtype, out in original dtype)
    io_bytes = 2 * tm * D_in_p * op_isz + 2 * tm * D_out_p * out_isz
    resident_w_bytes = (2 * (D_in_p + D_out_p) * D_hid_p * op_isz
                        + 2 * (D_hid_p + D_out_p) * b_isz)

    use_resident = (not force_ksplit) and (io_bytes + resident_w_bytes <= budget)

    if use_resident:
        # -------- weight-stationary path: grid over token tiles only -----------------
        grid = (n_i,)
        in_specs = [
            pl.BlockSpec((tm, D_in_p), lambda i: (i, 0)),          # x tile
            pl.BlockSpec((D_in_p, D_hid_p), lambda i: (0, 0)),     # W1 (resident)
            pl.BlockSpec((1, D_hid_p), lambda i: (0, 0)),          # b1 (resident)
            pl.BlockSpec((D_hid_p, D_out_p), lambda i: (0, 0)),    # W2 (resident)
            pl.BlockSpec((1, D_out_p), lambda i: (0, 0)),          # b2 (resident)
        ]
        out_specs = pl.BlockSpec((tm, D_out_p), lambda i: (i, 0))
        scratch_shapes = []
        kernel = functools.partial(_mlp_kernel_resident, approx_gelu=approx_gelu)
        dim_sem = ("parallel",)
        vmem_needed = io_bytes + resident_w_bytes
        weight_reads = 1
    else:
        # -------- fallback: hidden-axis reduction with f32 accumulator ---------------
        tk = tk_hidden
        if tk is None:
            tk = 128
            for cand in (2048, 1024, 512, 256, 128):
                if cand > D_hid_p:
                    continue
                need = (io_bytes
                        + 2 * (D_in_p + D_out_p) * cand * op_isz
                        + 2 * (cand + D_out_p) * b_isz
                        + tm * D_out_p * 4)                 # f32 accumulator
                if need <= budget:
                    tk = cand
                    break
        tk = min(_round_up(int(tk), 128), D_hid_p)
        n_k = pl.cdiv(D_hid_p, tk)
        D_hid_p = n_k * tk                                   # tk divides padded hidden
        grid = (n_i, n_k)
        in_specs = [
            pl.BlockSpec((tm, D_in_p), lambda i, k: (i, 0)),   # x tile (resident over k)
            pl.BlockSpec((D_in_p, tk), lambda i, k: (0, k)),   # W1 hidden slab
            pl.BlockSpec((1, tk), lambda i, k: (0, k)),        # b1 hidden slab
            pl.BlockSpec((tk, D_out_p), lambda i, k: (k, 0)),  # W2 hidden slab
            pl.BlockSpec((1, D_out_p), lambda i, k: (0, 0)),   # b2
        ]
        out_specs = pl.BlockSpec((tm, D_out_p), lambda i, k: (i, 0))
        scratch_shapes = [pltpu.VMEM((tm, D_out_p), jnp.float32)]
        kernel = functools.partial(_mlp_kernel_ksplit, approx_gelu=approx_gelu)
        dim_sem = ("parallel", "arbitrary")
        vmem_needed = (io_bytes
                       + 2 * (D_in_p + D_out_p) * tk * op_isz
                       + 2 * (tk + D_out_p) * b_isz
                       + tm * D_out_p * 4)
        weight_reads = n_i

    vmem_limit = int(min(budget, max(vmem_needed + vmem_needed // 4,
                                     16 * 1024 * 1024)))

    # ---- padding (exact: zero x cols hit zero W1 rows; zero hidden units give
    #      GELU(0)=0 against zero W2 rows; padded token rows are sliced off) ----------
    x2d = _pad2d(x.reshape(M, D_in), M_p, D_in_p)
    w1_p = _pad2d(w1, D_in_p, D_hid_p)
    w2_p = _pad2d(w2, D_hid_p, D_out_p)
    b1_p = _pad2d(b1.reshape(1, D_hid), 1, D_hid_p)
    b2_p = _pad2d(b2.reshape(1, D_out), 1, D_out_p)

    flops = 2 * M_p * D_hid_p * (D_in_p + D_out_p)
    bytes_accessed = int(
        x2d.size * op_isz
        + weight_reads * (w1_p.size + w2_p.size) * op_isz
        + weight_reads * (b1_p.size + b2_p.size) * b_isz
        + M_p * D_out_p * out_isz)

    out2d = pl.pallas_call(
        kernel,
        out_shape=jax.ShapeDtypeStruct((M_p, D_out_p), orig_dtype),
        grid_spec=pltpu.PrefetchScalarGridSpec(
            num_scalar_prefetch=0,
            grid=grid,
            in_specs=in_specs,
            out_specs=out_specs,
            scratch_shapes=scratch_shapes,
        ),
        compiler_params=pltpu.CompilerParams(
            dimension_semantics=dim_sem,
            vmem_limit_bytes=vmem_limit,
        ),
        cost_estimate=pl.CostEstimate(
            flops=flops,
            transcendentals=M_p * D_hid_p,
            bytes_accessed=bytes_accessed,
        ),
    )(x2d, w1_p, b1_p, w2_p, b2_p)

    out = out2d[:M, :D_out]
    return out.reshape(*lead, D_out) if lead else out.reshape(D_out)


def _reference(x, w1, b1, w2, b2):
    h = x @ w1 + b1
    h = 0.5 * h * (1.0 + jax.lax.erf(h * _INV_SQRT2))
    return h @ w2 + b2


if __name__ == "__main__":
    # ViT-style token count (196 patches + cls) so the padding / multi-tile path is
    # exercised; small feature dims keep the test light.
    B, N = 2, 197
    in_features, hidden_features, out_features = 64, 256, 64

    key = jax.random.PRNGKey(0)
    kx, kw1, kb1, kw2, kb2 = jax.random.split(key, 5)

    x = jax.random.normal(kx, (B, N, in_features), dtype=jnp.float32)

    # nn.Linear-style uniform(-1/sqrt(fan_in), 1/sqrt(fan_in)) init, stored as [in, out].
    lim1 = 1.0 / math.sqrt(in_features)
    w1 = jax.random.uniform(kw1, (in_features, hidden_features),
                            minval=-lim1, maxval=lim1, dtype=jnp.float32)
    b1 = jax.random.uniform(kb1, (hidden_features,),
                            minval=-lim1, maxval=lim1, dtype=jnp.float32)

    lim2 = 1.0 / math.sqrt(hidden_features)
    w2 = jax.random.uniform(kw2, (hidden_features, out_features),
                            minval=-lim2, maxval=lim2, dtype=jnp.float32)
    b2 = jax.random.uniform(kb2, (out_features,),
                            minval=-lim2, maxval=lim2, dtype=jnp.float32)

    ref = _reference(x, w1, b1, w2, b2)

    # 1) exact f32, weight-resident path
    out = jax.block_until_ready(standard_mlp(x, w1, b1, w2, b2))
    assert out.shape == (B, N, out_features), out.shape
    err = float(jnp.max(jnp.abs(out - ref)))
    assert jnp.allclose(out, ref, atol=5e-4, rtol=5e-4), err

    # 2) bf16 MXU-operand path (f32 accumulation kept); loose tolerance
    out_bf = jax.block_until_ready(
        standard_mlp(x, w1, b1, w2, b2, compute_dtype=jnp.bfloat16))
    assert out_bf.shape == (B, N, out_features)
    assert bool(jnp.all(jnp.isfinite(out_bf)))
    assert float(jnp.max(jnp.abs(out_bf - ref))) < 0.25

    # 3) hidden-axis k-split fallback path (exact f32)
    out_ks = jax.block_until_ready(
        standard_mlp(x, w1, b1, w2, b2, force_ksplit=True, tk_hidden=128))
    err_ks = float(jnp.max(jnp.abs(out_ks - ref)))
    assert jnp.allclose(out_ks, ref, atol=5e-4, rtol=5e-4), err_ks

    # 4) tanh-approx GELU path (perf option; small documented deviation from erf)
    out_tanh = jax.block_until_ready(
        standard_mlp(x, w1, b1, w2, b2, approx_gelu=True))
    assert float(jnp.max(jnp.abs(out_tanh - ref))) < 5e-2

    print("KERNEL_OK")
</pallas_src>

<mosaic_0001>
module attributes {stable_mosaic.version = 11 : i64} {
  func.func @_mlp_kernel_resident(%arg0: i32, %arg1: memref<200x128xf32, #tpu.memory_space<vmem>>, %arg2: memref<128x256xf32, #tpu.memory_space<vmem>>, %arg3: memref<1x256xf32, #tpu.memory_space<vmem>>, %arg4: memref<256x128xf32, #tpu.memory_space<vmem>>, %arg5: memref<1x128xf32, #tpu.memory_space<vmem>>, %arg6: memref<200x128xf32, #tpu.memory_space<vmem>>) attributes {dimension_semantics = [#tpu.dimension_semantics<parallel>], iteration_bounds = array<i64: 2>, scalar_prefetch = 0 : i64, scratch_operands = 0 : i64, tpu.core_type = #tpu.core_type<tc>, window_params = [{transform_indices = @transform_0, window_bounds = array<i64: 200, 128>}, {pipeline_mode = #tpu.pipeline_mode<synchronous>, transform_indices = @transform_1, window_bounds = array<i64: 128, 256>}, {pipeline_mode = #tpu.pipeline_mode<synchronous>, transform_indices = @transform_2, window_bounds = array<i64: 1, 256>}, {pipeline_mode = #tpu.pipeline_mode<synchronous>, transform_indices = @transform_3, window_bounds = array<i64: 256, 128>}, {pipeline_mode = #tpu.pipeline_mode<synchronous>, transform_indices = @transform_4, window_bounds = array<i64: 1, 128>}, {transform_indices = @transform_5, window_bounds = array<i64: 200, 128>}]} {
    %c0 = arith.constant 0 : index
    %c0_0 = arith.constant 0 : index
    %0 = vector.load %arg1[%c0, %c0_0] : memref<200x128xf32, #tpu.memory_space<vmem>>, vector<200x128xf32>
    %c0_1 = arith.constant 0 : index
    %c0_2 = arith.constant 0 : index
    %1 = vector.load %arg2[%c0_1, %c0_2] : memref<128x256xf32, #tpu.memory_space<vmem>>, vector<128x256xf32>
    %cst = arith.constant dense<0.000000e+00> : vector<200x256xf32>
    %2 = tpu.matmul %0, %1, %cst {dimension_numbers = #tpu.dot_dimension_numbers<[1], [0], [0], [1], [0, 0, 1, 1], [], []>} : vector<200x128xf32>, vector<128x256xf32>, vector<200x256xf32> -> vector<200x256xf32>
    %c0_3 = arith.constant 0 : index
    %c0_4 = arith.constant 0 : index
    %3 = vector.load %arg3[%c0_3, %c0_4] : memref<1x256xf32, #tpu.memory_space<vmem>>, vector<1x256xf32>
    %4 = vector.broadcast %3 : vector<1x256xf32> to vector<200x256xf32>
    %5 = arith.addf %2, %4 : vector<200x256xf32>
    %cst_5 = arith.constant 5.000000e-01 : f32
    %6 = vector.broadcast %cst_5 : f32 to vector<200x256xf32>
    %7 = arith.mulf %6, %5 : vector<200x256xf32>
    %cst_6 = arith.constant 0.707106769 : f32
    %8 = vector.broadcast %cst_6 : f32 to vector<200x256xf32>
    %9 = arith.mulf %5, %8 : vector<200x256xf32>
    %10 = math.erf %9 : vector<200x256xf32>
    %cst_7 = arith.constant 1.000000e+00 : f32
    %11 = vector.broadcast %cst_7 : f32 to vector<200x256xf32>
    %12 = arith.addf %11, %10 : vector<200x256xf32>
    %13 = arith.mulf %7, %12 : vector<200x256xf32>
    %c0_8 = arith.constant 0 : index
    %c0_9 = arith.constant 0 : index
    %14 = vector.load %arg4[%c0_8, %c0_9] : memref<256x128xf32, #tpu.memory_space<vmem>>, vector<256x128xf32>
    %cst_10 = arith.constant dense<0.000000e+00> : vector<200x128xf32>
    %15 = tpu.matmul %13, %14, %cst_10 {dimension_numbers = #tpu.dot_dimension_numbers<[1], [0], [0], [1], [0, 0, 1, 1], [], []>} : vector<200x256xf32>, vector<256x128xf32>, vector<200x128xf32> -> vector<200x128xf32>
    %c0_11 = arith.constant 0 : index
    %c0_12 = arith.constant 0 : index
    %16 = vector.load %arg5[%c0_11, %c0_12] : memref<1x128xf32, #tpu.memory_space<vmem>>, vector<1x128xf32>
    %17 = vector.broadcast %16 : vector<1x128xf32> to vector<200x128xf32>
    %18 = arith.addf %15, %17 : vector<200x128xf32>
    %c0_13 = arith.constant 0 : index
    %c0_14 = arith.constant 0 : index
    %19 = vector.load %arg6[%c0_13, %c0_14] : memref<200x128xf32, #tpu.memory_space<vmem>>, vector<200x128xf32>
    tpu.vector_store %arg6[%c0_13, %c0_14], %18 {strides = array<i32>} : memref<200x128xf32, #tpu.memory_space<vmem>>, vector<200x128xf32>,
    return
  }
  func.func @transform_0(%arg0: i32) -> (i32, i32) {
    %c0_i32 = arith.constant 0 : i32
    %c0_i32_0 = arith.constant 0 : i32
    return %arg0, %c0_i32 : i32, i32
  }
  func.func @transform_1(%arg0: i32) -> (i32, i32) {
    %c0_i32 = arith.constant 0 : i32
    %c0_i32_0 = arith.constant 0 : i32
    %c0_i32_1 = arith.constant 0 : i32
    return %c0_i32, %c0_i32_0 : i32, i32
  }
  func.func @transform_2(%arg0: i32) -> (i32, i32) {
    %c0_i32 = arith.constant 0 : i32
    %c0_i32_0 = arith.constant 0 : i32
    %c0_i32_1 = arith.constant 0 : i32
    return %c0_i32, %c0_i32_0 : i32, i32
  }
  func.func @transform_3(%arg0: i32) -> (i32, i32) {
    %c0_i32 = arith.constant 0 : i32
    %c0_i32_0 = arith.constant 0 : i32
    %c0_i32_1 = arith.constant 0 : i32
    return %c0_i32, %c0_i32_0 : i32, i32
  }
  func.func @transform_4(%arg0: i32) -> (i32, i32) {
    %c0_i32 = arith.constant 0 : i32
    %c0_i32_0 = arith.constant 0 : i32
    %c0_i32_1 = arith.constant 0 : i32
    return %c0_i32, %c0_i32_0 : i32, i32
  }
  func.func @transform_5(%arg0: i32) -> (i32, i32) {
    %c0_i32 = arith.constant 0 : i32
    %c0_i32_0 = arith.constant 0 : i32
    return %arg0, %c0_i32 : i32, i32
  }
}

</mosaic_0001>

<llo_original>
// kernel: tpu_custom_call.1
$region0: #{tpu_custom_call.1}
  #allocation0 [shape = 'u32[]', space=smem, size = 0x4, offset = 0x4, fixed_abs, tag = 'smem constant byte address 0x4 - core index']
  #allocation1 [shape = 'u32[144,128]{1,0:T(1,128)}', space=vmem, size = 0x12000, scoped, tag = 'internal scratch']
  %s0 = inlined_call_operand.hbm [shape: f32[400,128], index: 0, kind: input, shape index: {}]
  %s1 = inlined_call_operand.hbm [shape: f32[128,256], index: 1, kind: input, shape index: {}]
  %s2 = inlined_call_operand.vmem [shape: f32[1,256], index: 2, kind: input, shape index: {}]
  %s3 = inlined_call_operand.hbm [shape: f32[256,128], index: 3, kind: input, shape index: {}]
  %s4 = inlined_call_operand.vmem [shape: f32[1,128], index: 4, kind: input, shape index: {}]
  %s5 = inlined_call_operand.hbm [shape: f32[400,128], index: 5, kind: output, shape index: {}]
  %s6 = sld [smem:[#allocation0]]
  $region65: #{tpu_custom_call.1} parent=0
    _
  %s8 = ssub.s32 1, %s6
  %s9 = scalar_select 0, %s8, %s6
  $region1: #{tpu_custom_call.1} parent=0
    #allocation2 [shape = 'u8[204800]{0}', space=vmem, size = 0x32000, scoped, tag = 'input window, operand 0']
    #allocation3 [shape = 's32[2]{0}', space=sflag, size = 0x8, scoped, tag = 'scoped memory for tpu_custom_call.1']
    #allocation4 [shape = 's32[2]{0}', space=sflag, size = 0x8, scoped, tag = 'scoped memory for tpu_custom_call.1']
    #allocation5 [shape = 'u8[131072]{0}', space=vmem, size = 0x20000, scoped, tag = 'input window, operand 1, single buffered']
    #allocation6 [shape = 's32[1]{0}', space=sflag, size = 0x4, scoped, tag = 'scoped memory for tpu_custom_call.1']
    #allocation7 [shape = 'u8[131072]{0}', space=vmem, size = 0x20000, scoped, tag = 'input window, operand 3, single buffered']
    #allocation8 [shape = 'u8[204800]{0}', space=vmem, size = 0x32000, scoped, tag = 'output window, operand 0']
    %10 = vsyncpa [#allocation3], 0
    %s11 = scalar_lea.sflag [#allocation3], 1
    %12 = vsyncpa %s11, 0
    %13 = vsyncpa [#allocation6], 0
    %14 = vsyncpa [#allocation4], 0
    %s15 = scalar_lea.sflag [#allocation4], 1
    %16 = vsyncpa %s15, 0
    loop: start=0, step=1, limit=4
    $region2: #{tpu_custom_call.1} parent=1 // loop_pre_header
      _
    $region3: #{tpu_custom_call.1} parent=1 // loop_header
      %s18 = sphi 0, %s22
      %p19 = scmp.ge.s32.totalorder %s18, 4
      %s28 = sphi 0, %s30
      %s31 = sphi 0, %s28
      %s32 = sphi 0, %s31
      %s48 = sphi 0, %s32
      %s52 = sphi 0, %s52
      %s54 = sphi 0, %s52
      %s55 = sphi 0, %s54
      %s69 = sphi 0, %s55
      %s73 = sphi 0, %s73
      %s75 = sphi 0, %s73
      %s76 = sphi 0, %s75
      %s90 = sphi 0, %s76
      %s94 = sphi 0, %s94
      %s96 = sphi 0, %s94
      %s97 = sphi 0, %s96
      %s111 = sphi 0, %s97
      %s115 = sphi 0, %s115
      %s117 = sphi 0, %s115
      %s118 = sphi 0, %s117
      %s132 = sphi 0, %s118
      %s138 = sphi 0, %s140
      %s141 = sphi 0, %s138
      %s142 = sphi 0, %s141
      %s158 = sphi 0, %s142
    $region4: #{tpu_custom_call.1} parent=1 // loop_header_branch
      %21 = sbr.rel (%p19) target = $region8
    $region5: #{tpu_custom_call.1} parent=1 // loop_body
      %s23 = ssub.s32 %s18, 1
      %s24 = ssub.s32 %s18, 2
      %s25 = sadd.s32 %s18, 1
      %s26 = ssub.s32 %s18, %s25
      %p27 = scmp.eq.s32.totalorder %s26, 0
      %s29 = sadd.s32 %s28, 1
      %s30 = scalar_select %p27, %s28, %s29
      %p33 = pneg %p27
      %p34 = scmp.eq.s32.totalorder %s18, 1
      %p35 = por %p33, %p34
      %p36 = scmp.ne.s32.totalorder %s28, %s31
      %p37 = scmp.eq.s32.totalorder %s18, 0
      %p38 = por %p36, %p37
      %p39 = scmp.ne.s32.totalorder %s28, %s31
      %p40 = scmp.eq.s32.totalorder %s23, 1
      %p41 = por %p39, %p40
      %p42 = scmp.ne.s32.totalorder %s31, %s32
      %p43 = scmp.eq.s32.totalorder %s23, 0
      %p44 = por %p42, %p43
      %p45 = scmp.ne.s32.totalorder %s31, %s32
      %p46 = scmp.eq.s32.totalorder %s24, 1
      %p47 = por %p45, %p46
      %p49 = scmp.ne.s32.totalorder %s32, %s48
      %p50 = scmp.eq.s32.totalorder %s24, 0
      %p51 = por %p49, %p50
      %s53 = sadd.s32 %s52, 1
      %p56 = scmp.eq.s32.totalorder %s18, 1
      %p57 = scmp.ne.s32.totalorder %s52, %s54
      %p58 = scmp.eq.s32.totalorder %s18, 0
      %p59 = por %p57, %p58
      %p60 = scmp.ne.s32.totalorder %s52, %s54
      %p61 = scmp.eq.s32.totalorder %s23, 1
      %p62 = por %p60, %p61
      %p63 = scmp.ne.s32.totalorder %s54, %s55
      %p64 = scmp.eq.s32.totalorder %s23, 0
      %p65 = por %p63, %p64
      %p66 = scmp.ne.s32.totalorder %s54, %s55
      %p67 = scmp.eq.s32.totalorder %s24, 1
      %p68 = por %p66, %p67
      %p70 = scmp.ne.s32.totalorder %s55, %s69
      %p71 = scmp.eq.s32.totalorder %s24, 0
      %p72 = por %p70, %p71
      %s74 = sadd.s32 %s73, 1
      %p77 = scmp.eq.s32.totalorder %s18, 1
      %p78 = scmp.ne.s32.totalorder %s73, %s75
      %p79 = scmp.eq.s32.totalorder %s18, 0
      %p80 = por %p78, %p79
      %p81 = scmp.ne.s32.totalorder %s73, %s75
      %p82 = scmp.eq.s32.totalorder %s23, 1
      %p83 = por %p81, %p82
      %p84 = scmp.ne.s32.totalorder %s75, %s76
      %p85 = scmp.eq.s32.totalorder %s23, 0
      %p86 = por %p84, %p85
      %p87 = scmp.ne.s32.totalorder %s75, %s76
      %p88 = scmp.eq.s32.totalorder %s24, 1
      %p89 = por %p87, %p88
      %p91 = scmp.ne.s32.totalorder %s76, %s90
      %p92 = scmp.eq.s32.totalorder %s24, 0
      %p93 = por %p91, %p92
      %s95 = sadd.s32 %s94, 1
      %p98 = scmp.eq.s32.totalorder %s18, 1
      %p99 = scmp.ne.s32.totalorder %s94, %s96
      %p100 = scmp.eq.s32.totalorder %s18, 0
      %p101 = por %p99, %p100
      %p102 = scmp.ne.s32.totalorder %s94, %s96
      %p103 = scmp.eq.s32.totalorder %s23, 1
      %p104 = por %p102, %p103
      %p105 = scmp.ne.s32.totalorder %s96, %s97
      %p106 = scmp.eq.s32.totalorder %s23, 0
      %p107 = por %p105, %p106
      %p108 = scmp.ne.s32.totalorder %s96, %s97
      %p109 = scmp.eq.s32.totalorder %s24, 1
      %p110 = por %p108, %p109
      %p112 = scmp.ne.s32.totalorder %s97, %s111
      %p113 = scmp.eq.s32.totalorder %s24, 0
      %p114 = por %p112, %p113
      %s116 = sadd.s32 %s115, 1
      %p119 = scmp.eq.s32.totalorder %s18, 1
      %p120 = scmp.ne.s32.totalorder %s115, %s117
      %p121 = scmp.eq.s32.totalorder %s18, 0
      %p122 = por %p120, %p121
      %p123 = scmp.ne.s32.totalorder %s115, %s117
      %p124 = scmp.eq.s32.totalorder %s23, 1
      %p125 = por %p123, %p124
      %p126 = scmp.ne.s32.totalorder %s117, %s118
      %p127 = scmp.eq.s32.totalorder %s23, 0
      %p128 = por %p126, %p127
      %p129 = scmp.ne.s32.totalorder %s117, %s118
      %p130 = scmp.eq.s32.totalorder %s24, 1
      %p131 = por %p129, %p130
      %p133 = scmp.ne.s32.totalorder %s118, %s132
      %p134 = scmp.eq.s32.totalorder %s24, 0
      %p135 = por %p133, %p134
      %s136 = ssub.s32 %s18, %s25
      %p137 = scmp.eq.s32.totalorder %s136, 0
      %s139 = sadd.s32 %s138, 1
      %s140 = scalar_select %p137, %s138, %s139
      %p143 = pneg %p137
      %p144 = scmp.eq.s32.totalorder %s18, 1
      %p145 = por %p143, %p144
      %p146 = scmp.ne.s32.totalorder %s138, %s141
      %p147 = scmp.eq.s32.totalorder %s18, 0
      %p148 = por %p146, %p147
      %p149 = scmp.ne.s32.totalorder %s138, %s141
      %p150 = scmp.eq.s32.totalorder %s23, 1
      %p151 = por %p149, %p150
      %p152 = scmp.ne.s32.totalorder %s141, %s142
      %p153 = scmp.eq.s32.totalorder %s23, 0
      %p154 = por %p152, %p153
      %p155 = scmp.ne.s32.totalorder %s141, %s142
      %p156 = scmp.eq.s32.totalorder %s24, 1
      %p157 = por %p155, %p156
      %p159 = scmp.ne.s32.totalorder %s142, %s158
      %p160 = scmp.eq.s32.totalorder %s24, 0
      %p161 = por %p159, %p160
      %p162 = scmp.le.s32.totalorder 1, %s18
      %p163 = scmp.lt.s32.totalorder %s18, 3
      %p164 = pnand %p162, %p163
      %p165 = pneg %p164
      // Predicated region
      $region9: #{tpu_custom_call.1} parent=5 // pred_check
        _
      $region10: #{tpu_custom_call.1} parent=5 // pred_check_branch
        %167 = sbr.rel (%p164) target = $region12
      $region11: #{tpu_custom_call.1} parent=5 // pred_region
        %s168 = ssub.s32 %s18, 1
        // Predicated region
        $region13: #{tpu_custom_call.1} parent=11 // pred_check
          %p169 = pneg %p65
        $region14: #{tpu_custom_call.1} parent=11 // pred_check_branch
          %171 = sbr.rel (%p169) target = $region16
        $region15: #{tpu_custom_call.1} parent=11 // pred_region
          %s173 = ssub.s32 4096, 4096
          %174 = vsyncadd [#allocation6], %s173
          %s175 = sshll.u32 [#allocation5], 4
          %s176 = int_to_ptr.vmem [resolvable:$true] %s175
          %181 = dma.hbm_to_vmem [thread:$0]  %s1, 4096, %s176, [#allocation6], 256, 256, 16
        $region16: #{tpu_custom_call.1} parent=11 // pred_fallthru
          _
        // Predicated region
        $region17: #{tpu_custom_call.1} parent=11 // pred_check
          %p182 = pneg %p86
        $region18: #{tpu_custom_call.1} parent=11 // pred_check_branch
          %184 = sbr.rel (%p182) target = $region20
        $region19: #{tpu_custom_call.1} parent=11 // pred_region
          _
        $region20: #{tpu_custom_call.1} parent=11 // pred_fallthru
          _
        // Predicated region
        $region21: #{tpu_custom_call.1} parent=11 // pred_check
          %p185 = pneg %p107
        $region22: #{tpu_custom_call.1} parent=11 // pred_check_branch
          %187 = sbr.rel (%p185) target = $region24
        $region23: #{tpu_custom_call.1} parent=11 // pred_region
          %s189 = ssub.s32 4096, 4096
          %190 = vsyncadd [#allocation6], %s189
          %s191 = sshll.u32 [#allocation7], 4
          %s192 = int_to_ptr.vmem [resolvable:$true] %s191
          %197 = dma.hbm_to_vmem [thread:$0]  %s3, 4096, %s192, [#allocation6], 128, 128, 8
        $region24: #{tpu_custom_call.1} parent=11 // pred_fallthru
          _
        // Predicated region
        $region25: #{tpu_custom_call.1} parent=11 // pred_check
          %p198 = pneg %p128
        $region26: #{tpu_custom_call.1} parent=11 // pred_check_branch
          %200 = sbr.rel (%p198) target = $region28
        $region27: #{tpu_custom_call.1} parent=11 // pred_region
          _
        $region28: #{tpu_custom_call.1} parent=11 // pred_fallthru
          _
      $region12: #{tpu_custom_call.1} parent=5 // pred_fallthru
        _
      %p201 = scmp.lt.s32.totalorder %s18, 2
      // Predicated region
      $region29: #{tpu_custom_call.1} parent=5 // pred_check
        %p202 = pneg %p201
      $region30: #{tpu_custom_call.1} parent=5 // pred_check_branch
        %204 = sbr.rel (%p202) target = $region32
      $region31: #{tpu_custom_call.1} parent=5 // pred_region
        // Predicated region
        $region33: #{tpu_custom_call.1} parent=31 // pred_check
          %p205 = pneg %p38
        $region34: #{tpu_custom_call.1} parent=31 // pred_check_branch
          %207 = sbr.rel (%p205) target = $region36
        $region35: #{tpu_custom_call.1} parent=31 // pred_region
          %s208 = sand.u32 %s28, 1
          %s209 = scalar_lea.sflag [#allocation3], %s208
          %s210 = sand.u32 %s28, 1
          %s211 = smul.addr %s210, 200
          %s212 = scalar_lea.vmem [#allocation2], %s211
          %s213 = smul.u32 25, %s18
          %s215 = ssub.s32 3200, 3200
          %216 = vsyncadd %s209, %s215
          %s217 = smul.addr %s213, 128
          %s218 = scalar_lea.hbm %s0, %s217
          %s219 = sshll.u32 %s212, 4
          %s220 = int_to_ptr.vmem [resolvable:$true] %s219
          %225 = dma.hbm_to_vmem [thread:$0]  %s218, 3200, %s220, %s209, 128, 128, 8
        $region36: #{tpu_custom_call.1} parent=31 // pred_fallthru
          _
      $region32: #{tpu_custom_call.1} parent=5 // pred_fallthru
        _
      %p226 = scmp.le.s32.totalorder 1, %s18
      %p227 = scmp.lt.s32.totalorder %s18, 3
      %p228 = pnand %p226, %p227
      %p229 = pneg %p228
      // Predicated region
      $region37: #{tpu_custom_call.1} parent=5 // pred_check
        _
      $region38: #{tpu_custom_call.1} parent=5 // pred_check_branch
        %231 = sbr.rel (%p228) target = $region40
      $region39: #{tpu_custom_call.1} parent=5 // pred_region
        %s232 = ssub.s32 %s18, 1
        %s233 = sand.u32 %s31, 1
        %s234 = scalar_lea.sflag [#allocation3], %s233
        %s235 = sand.u32 %s31, 1
        %s236 = smul.addr %s235, 200
        %s237 = scalar_lea.vmem [#allocation2], %s236
        // Predicated region
        $region41: #{tpu_custom_call.1} parent=39 // pred_check
          %p238 = pneg %p44
        $region42: #{tpu_custom_call.1} parent=39 // pred_check_branch
          %240 = sbr.rel (%p238) target = $region44
        $region43: #{tpu_custom_call.1} parent=39 // pred_region
          %241 = dma.done %s234, 3200
        $region44: #{tpu_custom_call.1} parent=39 // pred_fallthru
          _
        // Predicated region
        $region45: #{tpu_custom_call.1} parent=39 // pred_check
          %p242 = pneg %p65
        $region46: #{tpu_custom_call.1} parent=39 // pred_check_branch
          %244 = sbr.rel (%p242) target = $region48
        $region47: #{tpu_custom_call.1} parent=39 // pred_region
          %245 = dma.done [#allocation6], 4096
        $region48: #{tpu_custom_call.1} parent=39 // pred_fallthru
          _
        // Predicated region
        $region49: #{tpu_custom_call.1} parent=39 // pred_check
          %p246 = pneg %p107
        $region50: #{tpu_custom_call.1} parent=39 // pred_check_branch
          %248 = sbr.rel (%p246) target = $region52
        $region51: #{tpu_custom_call.1} parent=39 // pred_region
          %249 = dma.done [#allocation6], 4096
        $region52: #{tpu_custom_call.1} parent=39 // pred_fallthru
          _
        %s250 = sand.u32 %s31, 1
        %s251 = scalar_lea.sflag [#allocation3], %s250
        %s252 = sand.u32 %s31, 1
        %s253 = smul.addr %s252, 200
        %s254 = scalar_lea.vmem [#allocation2], %s253
        %p255 = pneg %p44
        %p256 = pneg %p41
        %p257 = pneg %p65
        %p258 = pneg %p62
        %p259 = pneg %p86
        %p260 = pneg %p83
        %p261 = pneg %p107
        %p262 = pneg %p104
        %p263 = pneg %p128
        %p264 = pneg %p125
        %p265 = pneg %p154
        %p266 = pneg %p151
        %s267 = sand.u32 %s141, 1
        %s268 = scalar_lea.sflag [#allocation4], %s267
        %s269 = sand.u32 %s141, 1
        %s270 = smul.addr %s269, 200
        %s271 = scalar_lea.vmem [#allocation8], %s270
        %s272 = smul.u32 25, %s23
        %s273 = smul.u32 25, %s23
        %v274 = vld [vmem:[%s237] sm:$0xff]
        %v275 = vld [vmem:[%s237 + $0x8] sm:$0xff]
        %v276 = vld [vmem:[%s237 + $0x10] sm:$0xff]
        %v277 = vld [vmem:[%s237 + $0x18] sm:$0xff]
        %v278 = vld [vmem:[%s237 + $0x20] sm:$0xff]
        %v279 = vld [vmem:[%s237 + $0x28] sm:$0xff]
        %v280 = vld [vmem:[%s237 + $0x30] sm:$0xff]
        %v281 = vld [vmem:[%s237 + $0x38] sm:$0xff]
        %v282 = vld [vmem:[%s237 + $0x40] sm:$0xff]
        %v283 = vld [vmem:[%s237 + $0x48] sm:$0xff]
        %v284 = vld [vmem:[%s237 + $0x50] sm:$0xff]
        %v285 = vld [vmem:[%s237 + $0x58] sm:$0xff]
        %v286 = vld [vmem:[%s237 + $0x60] sm:$0xff]
        %v287 = vld [vmem:[%s237 + $0x68] sm:$0xff]
        %v288 = vld [vmem:[%s237 + $0x70] sm:$0xff]
        %v289 = vld [vmem:[%s237 + $0x78] sm:$0xff]
        %v290 = vld [vmem:[%s237 + $0x80] sm:$0xff]
        %v291 = vld [vmem:[%s237 + $0x88] sm:$0xff]
        %v292 = vld [vmem:[%s237 + $0x90] sm:$0xff]
        %v293 = vld [vmem:[%s237 + $0x98] sm:$0xff]
        %v294 = vld [vmem:[%s237 + $0xa0] sm:$0xff]
        %v295 = vld [vmem:[%s237 + $0xa8] sm:$0xff]
        %v296 = vld [vmem:[%s237 + $0xb0] sm:$0xff]
        %v297 = vld [vmem:[%s237 + $0xb8] sm:$0xff]
        %v298 = vld [vmem:[%s237 + $0xc0] sm:$0xff]
        %v299 = vld [vmem:[#allocation5] sm:$0xff]
        %v300 = vld [vmem:[#allocation5 + $0x8] sm:$0xff]
        %v301 = vld [vmem:[#allocation5 + $0x10] sm:$0xff]
        %v302 = vld [vmem:[#allocation5 + $0x18] sm:$0xff]
        %v303 = vld [vmem:[#allocation5 + $0x20] sm:$0xff]
        %v304 = vld [vmem:[#allocation5 + $0x28] sm:$0xff]
        %v305 = vld [vmem:[#allocation5 + $0x30] sm:$0xff]
        %v306 = vld [vmem:[#allocation5 + $0x38] sm:$0xff]
        %v307 = vld [vmem:[#allocation5 + $0x40] sm:$0xff]
        %v308 = vld [vmem:[#allocation5 + $0x48] sm:$0xff]
        %v309 = vld [vmem:[#allocation5 + $0x50] sm:$0xff]
        %v310 = vld [vmem:[#allocation5 + $0x58] sm:$0xff]
        %v311 = vld [vmem:[#allocation5 + $0x60] sm:$0xff]
        %v312 = vld [vmem:[#allocation5 + $0x68] sm:$0xff]
        %v313 = vld [vmem:[#allocation5 + $0x70] sm:$0xff]
        %v314 = vld [vmem:[#allocation5 + $0x78] sm:$0xff]
        %v315 = vld [vmem:[#allocation5 + $0x80] sm:$0xff]
        %v316 = vld [vmem:[#allocation5 + $0x88] sm:$0xff]
        %v317 = vld [vmem:[#allocation5 + $0x90] sm:$0xff]
        %v318 = vld [vmem:[#allocation5 + $0x98] sm:$0xff]
        %v319 = vld [vmem:[#allocation5 + $0xa0] sm:$0xff]
        %v320 = vld [vmem:[#allocation5 + $0xa8] sm:$0xff]
        %v321 = vld [vmem:[#allocation5 + $0xb0] sm:$0xff]
        %v322 = vld [vmem:[#allocation5 + $0xb8] sm:$0xff]
        %v323 = vld [vmem:[#allocation5 + $0xc0] sm:$0xff]
        %v324 = vld [vmem:[#allocation5 + $0xc8] sm:$0xff]
        %v325 = vld [vmem:[#allocation5 + $0xd0] sm:$0xff]
        %v326 = vld [vmem:[#allocation5 + $0xd8] sm:$0xff]
        %v327 = vld [vmem:[#allocation5 + $0xe0] sm:$0xff]
        %v328 = vld [vmem:[#allocation5 + $0xe8] sm:$0xff]
        %v329 = vld [vmem:[#allocation5 + $0xf0] sm:$0xff]
        %v330 = vld [vmem:[#allocation5 + $0xf8] sm:$0xff]
        %v331 = vld [vmem:[%s2] sm:$0x3]
        %v333 = vlaneseq
        %v334 = vshrl.u32 %v333, 7
        %v335 = vsub.s32 0, %v334
        %v336 = vrot.slane %v331, %v335
        %v337 = vlaneseq
        %v338 = vshrl.u32 %v337, 7
        %v339 = vsub.s32 1, %v338
        %v340 = vrot.slane %v331, %v339
        %343 = vmatprep.subr.mxu0 %v300
        %344 = vmatpush1.msra.mxu0 %v299
        %345 = vmatprep.subr.mxu0 %v302
        %346 = vmatpush1.msra.mxu0 %v301
        %347 = vmatprep.subr.mxu0 %v304
        %348 = vmatpush1.msra.mxu0 %v303
        %349 = vmatprep.subr.mxu0 %v306
        %350 = vmatpush1.msra.mxu0 %v305
        %351 = vmatprep.subr.mxu0 %v308
        %352 = vmatpush1.msra.mxu0 %v307
        %353 = vmatprep.subr.mxu0 %v310
        %354 = vmatpush1.msra.mxu0 %v309
        %355 = vmatprep.subr.mxu0 %v312
        %356 = vmatpush1.msra.mxu0 %v311
        %357 = vmatprep.subr.mxu0 %v314
        %358 = vmatpush1.msra.mxu0 %v313
        %359 = vmatprep.subr.mxu0 %v316
        %360 = vmatpush1.msra.mxu0 %v315
        %361 = vmatprep.subr.mxu0 %v318
        %362 = vmatpush1.msra.mxu0 %v317
        %363 = vmatprep.subr.mxu0 %v320
        %364 = vmatpush1.msra.mxu0 %v319
        %365 = vmatprep.subr.mxu0 %v322
        %366 = vmatpush1.msra.mxu0 %v321
        %367 = vmatprep.subr.mxu0 %v324
        %368 = vmatpush1.msra.mxu0 %v323
        %369 = vmatprep.subr.mxu0 %v326
        %370 = vmatpush1.msra.mxu0 %v325
        %371 = vmatprep.subr.mxu0 %v328
        %372 = vmatpush1.msra.mxu0 %v327
        %373 = vmatprep.subr.mxu0 %v330
        %374 = vmatpush1.msra.mxu0 %v329
        %375 = vmatprep.subr.mxu0 0.0
        %376 = vmatpush1.msra.mxu0 0.0
        %377 = vmatprep.subr.mxu0 0.0
        %378 = vmatpush1.msra.mxu0 0.0
        %379 = vmatprep.subr.mxu0 0.0
        %380 = vmatpush1.msra.mxu0 0.0
        %381 = vmatprep.subr.mxu0 0.0
        %382 = vmatpush1.msra.mxu0 0.0
        %383 = vmatprep.subr.mxu0 0.0
        %384 = vmatpush1.msra.mxu0 0.0
        %385 = vmatprep.subr.mxu0 0.0
        %386 = vmatpush1.msra.mxu0 0.0
        %387 = vmatprep.subr.mxu0 0.0
        %388 = vmatpush1.msra.mxu0 0.0
        %389 = vmatprep.subr.mxu0 0.0
        %390 = vmatpush1.msra.mxu0 0.0
        %391 = vmatprep.subr.mxu0 0.0
        %392 = vmatpush1.msra.mxu0 0.0
        %393 = vmatprep.subr.mxu0 0.0
        %394 = vmatpush1.msra.mxu0 0.0
        %395 = vmatprep.subr.mxu0 0.0
        %396 = vmatpush1.msra.mxu0 0.0
        %397 = vmatprep.subr.mxu0 0.0
        %398 = vmatpush1.msra.mxu0 0.0
        %399 = vmatprep.subr.mxu0 0.0
        %400 = vmatpush1.msra.mxu0 0.0
        %401 = vmatprep.subr.mxu0 0.0
        %402 = vmatpush1.msra.mxu0 0.0
        %403 = vmatprep.subr.mxu0 0.0
        %404 = vmatpush1.msra.mxu0 0.0
        %405 = vmatprep.subr.mxu0 0.0
        %406 = vmatpush1.msra.mxu0 0.0
        %407 = vmatprep.mubr.f32.mxu0 0.0
        %408 = vmatmul.mubr.f32.gmra.mrb[0].mxu0 %v274
        %v409 = vpop.f32.mrb[0].mxu0
        %v410 = vadd.f32 %v336, %v409
        %v411 = vpop.f32.mrb[0].mxu0
        %v412 = vadd.f32 %v340, %v411
        %413 = vmatprep.mubr.f32.mxu0 0.0
        %414 = vmatmul.mubr.f32.gmra.mrb[0].mxu0 %v275
        %v415 = vpop.f32.mrb[0].mxu0
        %v416 = vadd.f32 %v336, %v415
        %v417 = vpop.f32.mrb[0].mxu0
        %v418 = vadd.f32 %v340, %v417
        %419 = vmatprep.mubr.f32.mxu0 0.0
        %420 = vmatmul.mubr.f32.gmra.mrb[0].mxu0 %v276
        %v421 = vpop.f32.mrb[0].mxu0
        %v422 = vadd.f32 %v336, %v421
        %v423 = vpop.f32.mrb[0].mxu0
        %v424 = vadd.f32 %v340, %v423
        %425 = vmatprep.mubr.f32.mxu0 0.0
        %426 = vmatmul.mubr.f32.gmra.mrb[0].mxu0 %v277
        %v427 = vpop.f32.mrb[0].mxu0
        %v428 = vadd.f32 %v336, %v427
        %v429 = vpop.f32.mrb[0].mxu0
        %v430 = vadd.f32 %v340, %v429
        %431 = vmatprep.mubr.f32.mxu0 0.0
        %432 = vmatmul.mubr.f32.gmra.mrb[0].mxu0 %v278
        %v433 = vpop.f32.mrb[0].mxu0
        %v434 = vadd.f32 %v336, %v433
        %v435 = vpop.f32.mrb[0].mxu0
        %v436 = vadd.f32 %v340, %v435
        %437 = vmatprep.mubr.f32.mxu0 0.0
        %438 = vmatmul.mubr.f32.gmra.mrb[0].mxu0 %v279
        %v439 = vpop.f32.mrb[0].mxu0
        %v440 = vadd.f32 %v336, %v439
        %v441 = vpop.f32.mrb[0].mxu0
        %v442 = vadd.f32 %v340, %v441
        %443 = vmatprep.mubr.f32.mxu0 0.0
        %444 = vmatmul.mubr.f32.gmra.mrb[0].mxu0 %v280
        %v445 = vpop.f32.mrb[0].mxu0
        %v446 = vadd.f32 %v336, %v445
        %v447 = vpop.f32.mrb[0].mxu0
        %v448 = vadd.f32 %v340, %v447
        %449 = vmatprep.mubr.f32.mxu0 0.0
        %450 = vmatmul.mubr.f32.gmra.mrb[0].mxu0 %v281
        %v451 = vpop.f32.mrb[0].mxu0
        %v452 = vadd.f32 %v336, %v451
        %v453 = vpop.f32.mrb[0].mxu0
        %v454 = vadd.f32 %v340, %v453
        %455 = vmatprep.mubr.f32.mxu0 0.0
        %456 = vmatmul.mubr.f32.gmra.mrb[0].mxu0 %v282
        %v457 = vpop.f32.mrb[0].mxu0
        %v458 = vadd.f32 %v336, %v457
        %v459 = vpop.f32.mrb[0].mxu0
        %v460 = vadd.f32 %v340, %v459
        %461 = vmatprep.mubr.f32.mxu0 0.0
        %462 = vmatmul.mubr.f32.gmra.mrb[0].mxu0 %v283
        %v463 = vpop.f32.mrb[0].mxu0
        %v464 = vadd.f32 %v336, %v463
        %v465 = vpop.f32.mrb[0].mxu0
        %v466 = vadd.f32 %v340, %v465
        %467 = vmatprep.mubr.f32.mxu0 0.0
        %468 = vmatmul.mubr.f32.gmra.mrb[0].mxu0 %v284
        %v469 = vpop.f32.mrb[0].mxu0
        %v470 = vadd.f32 %v336, %v469
        %v471 = vpop.f32.mrb[0].mxu0
        %v472 = vadd.f32 %v340, %v471
        %473 = vmatprep.mubr.f32.mxu0 0.0
        %474 = vmatmul.mubr.f32.gmra.mrb[0].mxu0 %v285
        %v475 = vpop.f32.mrb[0].mxu0
        %v476 = vadd.f32 %v336, %v475
        %v477 = vpop.f32.mrb[0].mxu0
        %v478 = vadd.f32 %v340, %v477
        %479 = vmatprep.mubr.f32.mxu0 0.0
        %480 = vmatmul.mubr.f32.gmra.mrb[0].mxu0 %v286
        %v481 = vpop.f32.mrb[0].mxu0
        %v482 = vadd.f32 %v336, %v481
        %v483 = vpop.f32.mrb[0].mxu0
        %v484 = vadd.f32 %v340, %v483
        %485 = vmatprep.mubr.f32.mxu0 0.0
        %486 = vmatmul.mubr.f32.gmra.mrb[0].mxu0 %v287
        %v487 = vpop.f32.mrb[0].mxu0
        %v488 = vadd.f32 %v336, %v487
        %v489 = vpop.f32.mrb[0].mxu0
        %v490 = vadd.f32 %v340, %v489
        %491 = vmatprep.mubr.f32.mxu0 0.0
        %492 = vmatmul.mubr.f32.gmra.mrb[0].mxu0 %v288
        %v493 = vpop.f32.mrb[0].mxu0
        %v494 = vadd.f32 %v336, %v493
        %v495 = vpop.f32.mrb[0].mxu0
        %v496 = vadd.f32 %v340, %v495
        %497 = vmatprep.mubr.f32.mxu0 0.0
        %498 = vmatmul.mubr.f32.gmra.mrb[0].mxu0 %v289
        %v499 = vpop.f32.mrb[0].mxu0
        %v500 = vadd.f32 %v336, %v499
        %v501 = vpop.f32.mrb[0].mxu0
        %v502 = vadd.f32 %v340, %v501
        %503 = vmatprep.mubr.f32.mxu0 0.0
        %504 = vmatmul.mubr.f32.gmra.mrb[0].mxu0 %v290
        %v505 = vpop.f32.mrb[0].mxu0
        %v506 = vadd.f32 %v336, %v505
        %v507 = vpop.f32.mrb[0].mxu0
        %v508 = vadd.f32 %v340, %v507
        %509 = vmatprep.mubr.f32.mxu0 0.0
        %510 = vmatmul.mubr.f32.gmra.mrb[0].mxu0 %v291
        %v511 = vpop.f32.mrb[0].mxu0
        %v512 = vadd.f32 %v336, %v511
        %v513 = vpop.f32.mrb[0].mxu0
        %v514 = vadd.f32 %v340, %v513
        %515 = vmatprep.mubr.f32.mxu0 0.0
        %516 = vmatmul.mubr.f32.gmra.mrb[0].mxu0 %v292
        %v517 = vpop.f32.mrb[0].mxu0
        %v518 = vadd.f32 %v336, %v517
        %v519 = vpop.f32.mrb[0].mxu0
        %v520 = vadd.f32 %v340, %v519
        %521 = vmatprep.mubr.f32.mxu0 0.0
        %522 = vmatmul.mubr.f32.gmra.mrb[0].mxu0 %v293
        %v523 = vpop.f32.mrb[0].mxu0
        %v524 = vadd.f32 %v336, %v523
        %v525 = vpop.f32.mrb[0].mxu0
        %v526 = vadd.f32 %v340, %v525
        %527 = vmatprep.mubr.f32.mxu0 0.0
        %528 = vmatmul.mubr.f32.gmra.mrb[0].mxu0 %v294
        %v529 = vpop.f32.mrb[0].mxu0
        %v530 = vadd.f32 %v336, %v529
        %v531 = vpop.f32.mrb[0].mxu0
        %v532 = vadd.f32 %v340, %v531
        %533 = vmatprep.mubr.f32.mxu0 0.0
        %534 = vmatmul.mubr.f32.gmra.mrb[0].mxu0 %v295
        %v535 = vpop.f32.mrb[0].mxu0
        %v536 = vadd.f32 %v336, %v535
        %v537 = vpop.f32.mrb[0].mxu0
        %v538 = vadd.f32 %v340, %v537
        %539 = vmatprep.mubr.f32.mxu0 0.0
        %540 = vmatmul.mubr.f32.gmra.mrb[0].mxu0 %v296
        %v541 = vpop.f32.mrb[0].mxu0
        %v542 = vadd.f32 %v336, %v541
        %v543 = vpop.f32.mrb[0].mxu0
        %v544 = vadd.f32 %v340, %v543
        %545 = vmatprep.mubr.f32.mxu0 0.0
        %546 = vmatmul.mubr.f32.gmra.mrb[0].mxu0 %v297
        %v547 = vpop.f32.mrb[0].mxu0
        %v548 = vadd.f32 %v336, %v547
        %v549 = vpop.f32.mrb[0].mxu0
        %v550 = vadd.f32 %v340, %v549
        %551 = vmatprep.mubr.f32.mxu0 0.0
        %552 = vmatmul.mubr.f32.gmra.mrb[0].mxu0 %v298
        %v553 = vpop.f32.mrb[0].mxu0
        %v554 = vadd.f32 %v336, %v553
        %v555 = vpop.f32.mrb[0].mxu0
        %v556 = vadd.f32 %v340, %v555
        %557 = vdwg.mxu0
        %v558 = vmul.f32 %v410, 0.5
        %v559 = vmul.f32 %v412, 0.5
        %v560 = vmul.f32 %v416, 0.5
        %v561 = vmul.f32 %v418, 0.5
        %v562 = vmul.f32 %v422, 0.5
        %v563 = vmul.f32 %v424, 0.5
        %v564 = vmul.f32 %v428, 0.5
        %v565 = vmul.f32 %v430, 0.5
        %v566 = vmul.f32 %v434, 0.5
        %v567 = vmul.f32 %v436, 0.5
        %v568 = vmul.f32 %v440, 0.5
        %v569 = vmul.f32 %v442, 0.5
        %v570 = vmul.f32 %v446, 0.5
        %v571 = vmul.f32 %v448, 0.5
        %v572 = vmul.f32 %v452, 0.5
        %v573 = vmul.f32 %v454, 0.5
        %v574 = vmul.f32 %v458, 0.5
        %v575 = vmul.f32 %v460, 0.5
        %v576 = vmul.f32 %v464, 0.5
        %v577 = vmul.f32 %v466, 0.5
        %v578 = vmul.f32 %v470, 0.5
        %v579 = vmul.f32 %v472, 0.5
        %v580 = vmul.f32 %v476, 0.5
        %v581 = vmul.f32 %v478, 0.5
        %v582 = vmul.f32 %v482, 0.5
        %v583 = vmul.f32 %v484, 0.5
        %v584 = vmul.f32 %v488, 0.5
        %v585 = vmul.f32 %v490, 0.5
        %v586 = vmul.f32 %v494, 0.5
        %v587 = vmul.f32 %v496, 0.5
        %v588 = vmul.f32 %v500, 0.5
        %v589 = vmul.f32 %v502, 0.5
        %v590 = vmul.f32 %v506, 0.5
        %v591 = vmul.f32 %v508, 0.5
        %v592 = vmul.f32 %v512, 0.5
        %v593 = vmul.f32 %v514, 0.5
        %v594 = vmul.f32 %v518, 0.5
        %v595 = vmul.f32 %v520, 0.5
        %v596 = vmul.f32 %v524, 0.5
        %v597 = vmul.f32 %v526, 0.5
        %v598 = vmul.f32 %v530, 0.5
        %v599 = vmul.f32 %v532, 0.5
        %v600 = vmul.f32 %v536, 0.5
        %v601 = vmul.f32 %v538, 0.5
        %v602 = vmul.f32 %v542, 0.5
        %v603 = vmul.f32 %v544, 0.5
        %v604 = vmul.f32 %v548, 0.5
        %v605 = vmul.f32 %v550, 0.5
        %v606 = vmul.f32 %v554, 0.5
        %v607 = vmul.f32 %v556, 0.5
        %v608 = vmul.f32 %v410, 0.70710677
        %v609 = vmul.f32 %v412, 0.70710677
        %v610 = vmul.f32 %v416, 0.70710677
        %v611 = vmul.f32 %v418, 0.70710677
        %v612 = vmul.f32 %v422, 0.70710677
        %v613 = vmul.f32 %v424, 0.70710677
        %v614 = vmul.f32 %v428, 0.70710677
        %v615 = vmul.f32 %v430, 0.70710677
        %v616 = vmul.f32 %v434, 0.70710677
        %v617 = vmul.f32 %v436, 0.70710677
        %v618 = vmul.f32 %v440, 0.70710677
        %v619 = vmul.f32 %v442, 0.70710677
        %v620 = vmul.f32 %v446, 0.70710677
        %v621 = vmul.f32 %v448, 0.70710677
        %v622 = vmul.f32 %v452, 0.70710677
        %v623 = vmul.f32 %v454, 0.70710677
        %v624 = vmul.f32 %v458, 0.70710677
        %v625 = vmul.f32 %v460, 0.70710677
        %v626 = vmul.f32 %v464, 0.70710677
        %v627 = vmul.f32 %v466, 0.70710677
        %v628 = vmul.f32 %v470, 0.70710677
        %v629 = vmul.f32 %v472, 0.70710677
        %v630 = vmul.f32 %v476, 0.70710677
        %v631 = vmul.f32 %v478, 0.70710677
        %v632 = vmul.f32 %v482, 0.70710677
        %v633 = vmul.f32 %v484, 0.70710677
        %v634 = vmul.f32 %v488, 0.70710677
        %v635 = vmul.f32 %v490, 0.70710677
        %v636 = vmul.f32 %v494, 0.70710677
        %v637 = vmul.f32 %v496, 0.70710677
        %v638 = vmul.f32 %v500, 0.70710677
        %v639 = vmul.f32 %v502, 0.70710677
        %v640 = vmul.f32 %v506, 0.70710677
        %v641 = vmul.f32 %v508, 0.70710677
        %v642 = vmul.f32 %v512, 0.70710677
        %v643 = vmul.f32 %v514, 0.70710677
        %v644 = vmul.f32 %v518, 0.70710677
        %v645 = vmul.f32 %v520, 0.70710677
        %v646 = vmul.f32 %v524, 0.70710677
        %v647 = vmul.f32 %v526, 0.70710677
        %v648 = vmul.f32 %v530, 0.70710677
        %v649 = vmul.f32 %v532, 0.70710677
        %v650 = vmul.f32 %v536, 0.70710677
        %v651 = vmul.f32 %v538, 0.70710677
        %v652 = vmul.f32 %v542, 0.70710677
        %v653 = vmul.f32 %v544, 0.70710677
        %v654 = vmul.f32 %v548, 0.70710677
        %v655 = vmul.f32 %v550, 0.70710677
        %v656 = vmul.f32 %v554, 0.70710677
        %v657 = vmul.f32 %v556, 0.70710677
        %v658 = verf.f32.pop %v608
        %v659 = verf.f32.pop %v609
        %v660 = verf.f32.pop %v610
        %v661 = verf.f32.pop %v611
        %v662 = verf.f32.pop %v612
        %v663 = verf.f32.pop %v613
        %v664 = verf.f32.pop %v614
        %v665 = verf.f32.pop %v615
        %v666 = verf.f32.pop %v616
        %v667 = verf.f32.pop %v617
        %v668 = verf.f32.pop %v618
        %v669 = verf.f32.pop %v619
        %v670 = verf.f32.pop %v620
        %v671 = verf.f32.pop %v621
        %v672 = verf.f32.pop %v622
        %v673 = verf.f32.pop %v623
        %v674 = verf.f32.pop %v624
        %v675 = verf.f32.pop %v625
        %v676 = verf.f32.pop %v626
        %v677 = verf.f32.pop %v627
        %v678 = verf.f32.pop %v628
        %v679 = verf.f32.pop %v629
        %v680 = verf.f32.pop %v630
        %v681 = verf.f32.pop %v631
        %v682 = verf.f32.pop %v632
        %v683 = verf.f32.pop %v633
        %v684 = verf.f32.pop %v634
        %v685 = verf.f32.pop %v635
        %v686 = verf.f32.pop %v636
        %v687 = verf.f32.pop %v637
        %v688 = verf.f32.pop %v638
        %v689 = verf.f32.pop %v639
        %v690 = verf.f32.pop %v640
        %v691 = verf.f32.pop %v641
        %v692 = verf.f32.pop %v642
        %v693 = verf.f32.pop %v643
        %v694 = verf.f32.pop %v644
        %v695 = verf.f32.pop %v645
        %v696 = verf.f32.pop %v646
        %v697 = verf.f32.pop %v647
        %v698 = verf.f32.pop %v648
        %v699 = verf.f32.pop %v649
        %v700 = verf.f32.pop %v650
        %v701 = verf.f32.pop %v651
        %v702 = verf.f32.pop %v652
        %v703 = verf.f32.pop %v653
        %v704 = verf.f32.pop %v654
        %v705 = verf.f32.pop %v655
        %v706 = verf.f32.pop %v656
        %v707 = verf.f32.pop %v657
        %v708 = vadd.f32 %v658, 1.0
        %v709 = vadd.f32 %v659, 1.0
        %v710 = vadd.f32 %v660, 1.0
        %v711 = vadd.f32 %v661, 1.0
        %v712 = vadd.f32 %v662, 1.0
        %v713 = vadd.f32 %v663, 1.0
        %v714 = vadd.f32 %v664, 1.0
        %v715 = vadd.f32 %v665, 1.0
        %v716 = vadd.f32 %v666, 1.0
        %v717 = vadd.f32 %v667, 1.0
        %v718 = vadd.f32 %v668, 1.0
        %v719 = vadd.f32 %v669, 1.0
        %v720 = vadd.f32 %v670, 1.0
        %v721 = vadd.f32 %v671, 1.0
        %v722 = vadd.f32 %v672, 1.0
        %v723 = vadd.f32 %v673, 1.0
        %v724 = vadd.f32 %v674, 1.0
        %v725 = vadd.f32 %v675, 1.0
        %v726 = vadd.f32 %v676, 1.0
        %v727 = vadd.f32 %v677, 1.0
        %v728 = vadd.f32 %v678, 1.0
        %v729 = vadd.f32 %v679, 1.0
        %v730 = vadd.f32 %v680, 1.0
        %v731 = vadd.f32 %v681, 1.0
        %v732 = vadd.f32 %v682, 1.0
        %v733 = vadd.f32 %v683, 1.0
        %v734 = vadd.f32 %v684, 1.0
        %v735 = vadd.f32 %v685, 1.0
        %v736 = vadd.f32 %v686, 1.0
        %v737 = vadd.f32 %v687, 1.0
        %v738 = vadd.f32 %v688, 1.0
        %v739 = vadd.f32 %v689, 1.0
        %v740 = vadd.f32 %v690, 1.0
        %v741 = vadd.f32 %v691, 1.0
        %v742 = vadd.f32 %v692, 1.0
        %v743 = vadd.f32 %v693, 1.0
        %v744 = vadd.f32 %v694, 1.0
        %v745 = vadd.f32 %v695, 1.0
        %v746 = vadd.f32 %v696, 1.0
        %v747 = vadd.f32 %v697, 1.0
        %v748 = vadd.f32 %v698, 1.0
        %v749 = vadd.f32 %v699, 1.0
        %v750 = vadd.f32 %v700, 1.0
        %v751 = vadd.f32 %v701, 1.0
        %v752 = vadd.f32 %v702, 1.0
        %v753 = vadd.f32 %v703, 1.0
        %v754 = vadd.f32 %v704, 1.0
        %v755 = vadd.f32 %v705, 1.0
        %v756 = vadd.f32 %v706, 1.0
        %v757 = vadd.f32 %v707, 1.0
        %v758 = vmul.f32 %v558, %v708
        %v759 = vmul.f32 %v559, %v709
        %v760 = vmul.f32 %v560, %v710
        %v761 = vmul.f32 %v561, %v711
        %v762 = vmul.f32 %v562, %v712
        %v763 = vmul.f32 %v563, %v713
        %v764 = vmul.f32 %v564, %v714
        %v765 = vmul.f32 %v565, %v715
        %v766 = vmul.f32 %v566, %v716
        %v767 = vmul.f32 %v567, %v717
        %v768 = vmul.f32 %v568, %v718
        %v769 = vmul.f32 %v569, %v719
        %v770 = vmul.f32 %v570, %v720
        %v771 = vmul.f32 %v571, %v721
        %v772 = vmul.f32 %v572, %v722
        %v773 = vmul.f32 %v573, %v723
        %v774 = vmul.f32 %v574, %v724
        %v775 = vmul.f32 %v575, %v725
        %v776 = vmul.f32 %v576, %v726
        %v777 = vmul.f32 %v577, %v727
        %v778 = vmul.f32 %v578, %v728
        %v779 = vmul.f32 %v579, %v729
        %v780 = vmul.f32 %v580, %v730
        %v781 = vmul.f32 %v581, %v731
        %v782 = vmul.f32 %v582, %v732
        %v783 = vmul.f32 %v583, %v733
        %v784 = vmul.f32 %v584, %v734
        %v785 = vmul.f32 %v585, %v735
        %v786 = vmul.f32 %v586, %v736
        %v787 = vmul.f32 %v587, %v737
        %v788 = vmul.f32 %v588, %v738
        %v789 = vmul.f32 %v589, %v739
        %v790 = vmul.f32 %v590, %v740
        %v791 = vmul.f32 %v591, %v741
        %v792 = vmul.f32 %v592, %v742
        %v793 = vmul.f32 %v593, %v743
        %v794 = vmul.f32 %v594, %v744
        %v795 = vmul.f32 %v595, %v745
        %v796 = vmul.f32 %v596, %v746
        %v797 = vmul.f32 %v597, %v747
        %v798 = vmul.f32 %v598, %v748
        %v799 = vmul.f32 %v599, %v749
        %v800 = vmul.f32 %v600, %v750
        %v801 = vmul.f32 %v601, %v751
        %v802 = vmul.f32 %v602, %v752
        %v803 = vmul.f32 %v603, %v753
        %v804 = vmul.f32 %v604, %v754
        %v805 = vmul.f32 %v605, %v755
        %v806 = vmul.f32 %v606, %v756
        %v807 = vmul.f32 %v607, %v757
        %v808 = vld [vmem:[#allocation7] sm:$0xff]
        %v809 = vld [vmem:[#allocation7 + $0x8] sm:$0xff]
        %v810 = vld [vmem:[#allocation7 + $0x10] sm:$0xff]
        %v811 = vld [vmem:[#allocation7 + $0x18] sm:$0xff]
        %v812 = vld [vmem:[#allocation7 + $0x20] sm:$0xff]
        %v813 = vld [vmem:[#allocation7 + $0x28] sm:$0xff]
        %v814 = vld [vmem:[#allocation7 + $0x30] sm:$0xff]
        %v815 = vld [vmem:[#allocation7 + $0x38] sm:$0xff]
        %v816 = vld [vmem:[#allocation7 + $0x40] sm:$0xff]
        %v817 = vld [vmem:[#allocation7 + $0x48] sm:$0xff]
        %v818 = vld [vmem:[#allocation7 + $0x50] sm:$0xff]
        %v819 = vld [vmem:[#allocation7 + $0x58] sm:$0xff]
        %v820 = vld [vmem:[#allocation7 + $0x60] sm:$0xff]
        %v821 = vld [vmem:[#allocation7 + $0x68] sm:$0xff]
        %v822 = vld [vmem:[#allocation7 + $0x70] sm:$0xff]
        %v823 = vld [vmem:[#allocation7 + $0x78] sm:$0xff]
        %v824 = vld [vmem:[#allocation7 + $0x80] sm:$0xff]
        %v825 = vld [vmem:[#allocation7 + $0x88] sm:$0xff]
        %v826 = vld [vmem:[#allocation7 + $0x90] sm:$0xff]
        %v827 = vld [vmem:[#allocation7 + $0x98] sm:$0xff]
        %v828 = vld [vmem:[#allocation7 + $0xa0] sm:$0xff]
        %v829 = vld [vmem:[#allocation7 + $0xa8] sm:$0xff]
        %v830 = vld [vmem:[#allocation7 + $0xb0] sm:$0xff]
        %v831 = vld [vmem:[#allocation7 + $0xb8] sm:$0xff]
        %v832 = vld [vmem:[#allocation7 + $0xc0] sm:$0xff]
        %v833 = vld [vmem:[#allocation7 + $0xc8] sm:$0xff]
        %v834 = vld [vmem:[#allocation7 + $0xd0] sm:$0xff]
        %v835 = vld [vmem:[#allocation7 + $0xd8] sm:$0xff]
        %v836 = vld [vmem:[#allocation7 + $0xe0] sm:$0xff]
        %v837 = vld [vmem:[#allocation7 + $0xe8] sm:$0xff]
        %v838 = vld [vmem:[#allocation7 + $0xf0] sm:$0xff]
        %v839 = vld [vmem:[#allocation7 + $0xf8] sm:$0xff]
        %v840 = vld [vmem:[%s4] sm:$0x1]
        %v842 = vlaneseq
        %v843 = vshrl.u32 %v842, 7
        %v844 = vsub.s32 0, %v843
        %v845 = vrot.slane %v840, %v844
        %847 = vmatprep.subr.mxu0 0.0
        %848 = vmatpush1.msra.mxu0 %v808
        %849 = vmatprep.subr.mxu0 0.0
        %850 = vmatpush1.msra.mxu0 %v809
        %851 = vmatprep.subr.mxu0 0.0
        %852 = vmatpush1.msra.mxu0 %v810
        %853 = vmatprep.subr.mxu0 0.0
        %854 = vmatpush1.msra.mxu0 %v811
        %855 = vmatprep.subr.mxu0 0.0
        %856 = vmatpush1.msra.mxu0 %v812
        %857 = vmatprep.subr.mxu0 0.0
        %858 = vmatpush1.msra.mxu0 %v813
        %859 = vmatprep.subr.mxu0 0.0
        %860 = vmatpush1.msra.mxu0 %v814
        %861 = vmatprep.subr.mxu0 0.0
        %862 = vmatpush1.msra.mxu0 %v815
        %863 = vmatprep.subr.mxu0 0.0
        %864 = vmatpush1.msra.mxu0 %v816
        %865 = vmatprep.subr.mxu0 0.0
        %866 = vmatpush1.msra.mxu0 %v817
        %867 = vmatprep.subr.mxu0 0.0
        %868 = vmatpush1.msra.mxu0 %v818
        %869 = vmatprep.subr.mxu0 0.0
        %870 = vmatpush1.msra.mxu0 %v819
        %871 = vmatprep.subr.mxu0 0.0
        %872 = vmatpush1.msra.mxu0 %v820
        %873 = vmatprep.subr.mxu0 0.0
        %874 = vmatpush1.msra.mxu0 %v821
        %875 = vmatprep.subr.mxu0 0.0
        %876 = vmatpush1.msra.mxu0 %v822
        %877 = vmatprep.subr.mxu0 0.0
        %878 = vmatpush1.msra.mxu0 %v823
        %879 = vmatprep.subr.mxu0 0.0
        %880 = vmatpush1.msra.mxu0 %v824
        %881 = vmatprep.subr.mxu0 0.0
        %882 = vmatpush1.msra.mxu0 %v825
        %883 = vmatprep.subr.mxu0 0.0
        %884 = vmatpush1.msra.mxu0 %v826
        %885 = vmatprep.subr.mxu0 0.0
        %886 = vmatpush1.msra.mxu0 %v827
        %887 = vmatprep.subr.mxu0 0.0
        %888 = vmatpush1.msra.mxu0 %v828
        %889 = vmatprep.subr.mxu0 0.0
        %890 = vmatpush1.msra.mxu0 %v829
        %891 = vmatprep.subr.mxu0 0.0
        %892 = vmatpush1.msra.mxu0 %v830
        %893 = vmatprep.subr.mxu0 0.0
        %894 = vmatpush1.msra.mxu0 %v831
        %895 = vmatprep.subr.mxu0 0.0
        %896 = vmatpush1.msra.mxu0 %v832
        %897 = vmatprep.subr.mxu0 0.0
        %898 = vmatpush1.msra.mxu0 %v833
        %899 = vmatprep.subr.mxu0 0.0
        %900 = vmatpush1.msra.mxu0 %v834
        %901 = vmatprep.subr.mxu0 0.0
        %902 = vmatpush1.msra.mxu0 %v835
        %903 = vmatprep.subr.mxu0 0.0
        %904 = vmatpush1.msra.mxu0 %v836
        %905 = vmatprep.subr.mxu0 0.0
        %906 = vmatpush1.msra.mxu0 %v837
        %907 = vmatprep.subr.mxu0 0.0
        %908 = vmatpush1.msra.mxu0 %v838
        %909 = vmatprep.subr.mxu0 0.0
        %910 = vmatpush1.msra.mxu0 %v839
        %911 = vmatprep.mubr.f32.mxu0 %v759
        %912 = vmatmul.mubr.f32.gmra.mrb[0].mxu0 %v758
        %v913 = vpop.f32.mrb[0].mxu0
        %v914 = vadd.f32 %v845, %v913
        %v915 = vpop.f32.mrb[0].mxu0
        %916 = vmatprep.mubr.f32.mxu0 %v761
        %917 = vmatmul.mubr.f32.gmra.mrb[0].mxu0 %v760
        %v918 = vpop.f32.mrb[0].mxu0
        %v919 = vadd.f32 %v845, %v918
        %v920 = vpop.f32.mrb[0].mxu0
        %921 = vmatprep.mubr.f32.mxu0 %v763
        %922 = vmatmul.mubr.f32.gmra.mrb[0].mxu0 %v762
        %v923 = vpop.f32.mrb[0].mxu0
        %v924 = vadd.f32 %v845, %v923
        %v925 = vpop.f32.mrb[0].mxu0
        %926 = vmatprep.mubr.f32.mxu0 %v765
        %927 = vmatmul.mubr.f32.gmra.mrb[0].mxu0 %v764
        %v928 = vpop.f32.mrb[0].mxu0
        %v929 = vadd.f32 %v845, %v928
        %v930 = vpop.f32.mrb[0].mxu0
        %931 = vmatprep.mubr.f32.mxu0 %v767
        %932 = vmatmul.mubr.f32.gmra.mrb[0].mxu0 %v766
        %v933 = vpop.f32.mrb[0].mxu0
        %v934 = vadd.f32 %v845, %v933
        %v935 = vpop.f32.mrb[0].mxu0
        %936 = vmatprep.mubr.f32.mxu0 %v769
        %937 = vmatmul.mubr.f32.gmra.mrb[0].mxu0 %v768
        %v938 = vpop.f32.mrb[0].mxu0
        %v939 = vadd.f32 %v845, %v938
        %v940 = vpop.f32.mrb[0].mxu0
        %941 = vmatprep.mubr.f32.mxu0 %v771
        %942 = vmatmul.mubr.f32.gmra.mrb[0].mxu0 %v770
        %v943 = vpop.f32.mrb[0].mxu0
        %v944 = vadd.f32 %v845, %v943
        %v945 = vpop.f32.mrb[0].mxu0
        %946 = vmatprep.mubr.f32.mxu0 %v773
        %947 = vmatmul.mubr.f32.gmra.mrb[0].mxu0 %v772
        %v948 = vpop.f32.mrb[0].mxu0
        %v949 = vadd.f32 %v845, %v948
        %v950 = vpop.f32.mrb[0].mxu0
        %951 = vmatprep.mubr.f32.mxu0 %v775
        %952 = vmatmul.mubr.f32.gmra.mrb[0].mxu0 %v774
        %v953 = vpop.f32.mrb[0].mxu0
        %v954 = vadd.f32 %v845, %v953
        %v955 = vpop.f32.mrb[0].mxu0
        %956 = vmatprep.mubr.f32.mxu0 %v777
        %957 = vmatmul.mubr.f32.gmra.mrb[0].mxu0 %v776
        %v958 = vpop.f32.mrb[0].mxu0
        %v959 = vadd.f32 %v845, %v958
        %v960 = vpop.f32.mrb[0].mxu0
        %961 = vmatprep.mubr.f32.mxu0 %v779
        %962 = vmatmul.mubr.f32.gmra.mrb[0].mxu0 %v778
        %v963 = vpop.f32.mrb[0].mxu0
        %v964 = vadd.f32 %v845, %v963
        %v965 = vpop.f32.mrb[0].mxu0
        %966 = vmatprep.mubr.f32.mxu0 %v781
        %967 = vmatmul.mubr.f32.gmra.mrb[0].mxu0 %v780
        %v968 = vpop.f32.mrb[0].mxu0
        %v969 = vadd.f32 %v845, %v968
        %v970 = vpop.f32.mrb[0].mxu0
        %971 = vmatprep.mubr.f32.mxu0 %v783
        %972 = vmatmul.mubr.f32.gmra.mrb[0].mxu0 %v782
        %v973 = vpop.f32.mrb[0].mxu0
        %v974 = vadd.f32 %v845, %v973
        %v975 = vpop.f32.mrb[0].mxu0
        %976 = vmatprep.mubr.f32.mxu0 %v785
        %977 = vmatmul.mubr.f32.gmra.mrb[0].mxu0 %v784
        %v978 = vpop.f32.mrb[0].mxu0
        %v979 = vadd.f32 %v845, %v978
        %v980 = vpop.f32.mrb[0].mxu0
        %981 = vmatprep.mubr.f32.mxu0 %v787
        %982 = vmatmul.mubr.f32.gmra.mrb[0].mxu0 %v786
        %v983 = vpop.f32.mrb[0].mxu0
        %v984 = vadd.f32 %v845, %v983
        %v985 = vpop.f32.mrb[0].mxu0
        %986 = vmatprep.mubr.f32.mxu0 %v789
        %987 = vmatmul.mubr.f32.gmra.mrb[0].mxu0 %v788
        %v988 = vpop.f32.mrb[0].mxu0
        %v989 = vadd.f32 %v845, %v988
        %v990 = vpop.f32.mrb[0].mxu0
        %991 = vmatprep.mubr.f32.mxu0 %v791
        %992 = vmatmul.mubr.f32.gmra.mrb[0].mxu0 %v790
        %v993 = vpop.f32.mrb[0].mxu0
        %v994 = vadd.f32 %v845, %v993
        %v995 = vpop.f32.mrb[0].mxu0
        %996 = vmatprep.mubr.f32.mxu0 %v793
        %997 = vmatmul.mubr.f32.gmra.mrb[0].mxu0 %v792
        %v998 = vpop.f32.mrb[0].mxu0
        %v999 = vadd.f32 %v845, %v998
        %v1000 = vpop.f32.mrb[0].mxu0
        %1001 = vmatprep.mubr.f32.mxu0 %v795
        %1002 = vmatmul.mubr.f32.gmra.mrb[0].mxu0 %v794
        %v1003 = vpop.f32.mrb[0].mxu0
        %v1004 = vadd.f32 %v845, %v1003
        %v1005 = vpop.f32.mrb[0].mxu0
        %1006 = vmatprep.mubr.f32.mxu0 %v797
        %1007 = vmatmul.mubr.f32.gmra.mrb[0].mxu0 %v796
        %v1008 = vpop.f32.mrb[0].mxu0
        %v1009 = vadd.f32 %v845, %v1008
        %v1010 = vpop.f32.mrb[0].mxu0
        %1011 = vmatprep.mubr.f32.mxu0 %v799
        %1012 = vmatmul.mubr.f32.gmra.mrb[0].mxu0 %v798
        %v1013 = vpop.f32.mrb[0].mxu0
        %v1014 = vadd.f32 %v845, %v1013
        %v1015 = vpop.f32.mrb[0].mxu0
        %1016 = vmatprep.mubr.f32.mxu0 %v801
        %1017 = vmatmul.mubr.f32.gmra.mrb[0].mxu0 %v800
        %v1018 = vpop.f32.mrb[0].mxu0
        %v1019 = vadd.f32 %v845, %v1018
        %v1020 = vpop.f32.mrb[0].mxu0
        %1021 = vmatprep.mubr.f32.mxu0 %v803
        %1022 = vmatmul.mubr.f32.gmra.mrb[0].mxu0 %v802
        %v1023 = vpop.f32.mrb[0].mxu0
        %v1024 = vadd.f32 %v845, %v1023
        %v1025 = vpop.f32.mrb[0].mxu0
        %1026 = vmatprep.mubr.f32.mxu0 %v805
        %1027 = vmatmul.mubr.f32.gmra.mrb[0].mxu0 %v804
        %v1028 = vpop.f32.mrb[0].mxu0
        %v1029 = vadd.f32 %v845, %v1028
        %v1030 = vpop.f32.mrb[0].mxu0
        %1031 = vmatprep.mubr.f32.mxu0 %v807
        %1032 = vmatmul.mubr.f32.gmra.mrb[0].mxu0 %v806
        %v1033 = vpop.f32.mrb[0].mxu0
        %v1034 = vadd.f32 %v845, %v1033
        %v1035 = vpop.f32.mrb[0].mxu0
        %1036 = vdwg.mxu0
        %1037 = vst [vmem:[%s271] sm:$0xff] %v914
        %1038 = vst [vmem:[%s271 + $0x8] sm:$0xff] %v919
        %1039 = vst [vmem:[%s271 + $0x10] sm:$0xff] %v924
        %1040 = vst [vmem:[%s271 + $0x18] sm:$0xff] %v929
        %1041 = vst [vmem:[%s271 + $0x20] sm:$0xff] %v934
        %1042 = vst [vmem:[%s271 + $0x28] sm:$0xff] %v939
        %1043 = vst [vmem:[%s271 + $0x30] sm:$0xff] %v944
        %1044 = vst [vmem:[%s271 + $0x38] sm:$0xff] %v949
        %1045 = vst [vmem:[%s271 + $0x40] sm:$0xff] %v954
        %1046 = vst [vmem:[%s271 + $0x48] sm:$0xff] %v959
        %1047 = vst [vmem:[%s271 + $0x50] sm:$0xff] %v964
        %1048 = vst [vmem:[%s271 + $0x58] sm:$0xff] %v969
        %1049 = vst [vmem:[%s271 + $0x60] sm:$0xff] %v974
        %1050 = vst [vmem:[%s271 + $0x68] sm:$0xff] %v979
        %1051 = vst [vmem:[%s271 + $0x70] sm:$0xff] %v984
        %1052 = vst [vmem:[%s271 + $0x78] sm:$0xff] %v989
        %1053 = vst [vmem:[%s271 + $0x80] sm:$0xff] %v994
        %1054 = vst [vmem:[%s271 + $0x88] sm:$0xff] %v999
        %1055 = vst [vmem:[%s271 + $0x90] sm:$0xff] %v1004
        %1056 = vst [vmem:[%s271 + $0x98] sm:$0xff] %v1009
        %1057 = vst [vmem:[%s271 + $0xa0] sm:$0xff] %v1014
        %1058 = vst [vmem:[%s271 + $0xa8] sm:$0xff] %v1019
        %1059 = vst [vmem:[%s271 + $0xb0] sm:$0xff] %v1024
        %1060 = vst [vmem:[%s271 + $0xb8] sm:$0xff] %v1029
        %1061 = vst [vmem:[%s271 + $0xc0] sm:$0xff] %v1034
        %s1062 = sand.u32 %s141, 1
        %s1063 = scalar_lea.sflag [#allocation4], %s1062
        %s1064 = sand.u32 %s141, 1
        %s1065 = smul.addr %s1064, 200
        %s1066 = scalar_lea.vmem [#allocation8], %s1065
        // Predicated region
        $region53: #{tpu_custom_call.1} parent=39 // pred_check
          %p1067 = pneg %p151
        $region54: #{tpu_custom_call.1} parent=39 // pred_check_branch
          %1069 = sbr.rel (%p1067) target = $region56
        $region55: #{tpu_custom_call.1} parent=39 // pred_region
          %s1070 = smul.u32 25, %s23
          %s1072 = ssub.s32 3200, 3200
          %1073 = vsyncadd %s1063, %s1072
          %s1074 = smul.addr %s1070, 128
          %s1075 = scalar_lea.hbm %s5, %s1074
          %s1076 = sshll.u32 %s1066, 4
          %s1077 = int_to_ptr.vmem [resolvable:$true] %s1076
          %1082 = dma.vmem_to_hbm [thread:$0]  %s1077, 3200, %s1075, %s1063, 128, 128, 8
        $region56: #{tpu_custom_call.1} parent=39 // pred_fallthru
          _
      $region40: #{tpu_custom_call.1} parent=5 // pred_fallthru
        _
      %p1083 = scmp.le.s32.totalorder 2, %s18
      // Predicated region
      $region57: #{tpu_custom_call.1} parent=5 // pred_check
        %p1084 = pneg %p1083
      $region58: #{tpu_custom_call.1} parent=5 // pred_check_branch
        %1086 = sbr.rel (%p1084) target = $region60
      $region59: #{tpu_custom_call.1} parent=5 // pred_region
        %s1087 = ssub.s32 %s18, 2
        // Predicated region
        $region61: #{tpu_custom_call.1} parent=59 // pred_check
          %p1088 = pneg %p157
        $region62: #{tpu_custom_call.1} parent=59 // pred_check_branch
          %1090 = sbr.rel (%p1088) target = $region64
        $region63: #{tpu_custom_call.1} parent=59 // pred_region
          %s1091 = sand.u32 %s142, 1
          %s1092 = scalar_lea.sflag [#allocation4], %s1091
          %s1093 = sand.u32 %s142, 1
          %s1094 = smul.addr %s1093, 200
          %s1095 = scalar_lea.vmem [#allocation8], %s1094
          %1096 = dma.done %s1092, 3200
        $region64: #{tpu_custom_call.1} parent=59 // pred_fallthru
          _
      $region60: #{tpu_custom_call.1} parent=5 // pred_fallthru
        _
    $region6: #{tpu_custom_call.1} parent=1 // loop_footer
      %s22 = sadd.s32 1, %s18
    $region7: #{tpu_custom_call.1} parent=1 // loop_footer_branch
      %17 = sbr.rel target = $region3
    $region8: #{tpu_custom_call.1} parent=1 // loop_exit
      _
    %1097 = vsyncpa [#allocation3], 1
    %s1098 = scalar_lea.sflag [#allocation3], 1
    %1099 = vsyncpa %s1098, 1
    %1100 = vsyncpa [#allocation6], 1
    %1101 = vsyncpa [#allocation4], 1
    %s1102 = scalar_lea.sflag [#allocation4], 1
    %1103 = vsyncpa %s1102, 1

</llo_original>
